<compile_context>
chip_gen: v7x
topology: tpu7x:2x2x1
jax: 0.10.0
libtpu: 0.0.40
codegen_flags: <defaults>
</compile_context>

<pallas_src>
import jax
import jax.numpy as jnp
from jax.experimental import pallas as pl
from jax.experimental.pallas import tpu as pltpu


def _round_up(x, m):
    return ((x + m - 1) // m) * m


def _cdiv(a, b):
    return -(-a // b)


def _network_kernel(x1_ref, x2_ref, w1a_ref, w1b_ref, b1_ref, w2_ref, w3_ref, w4_ref,
                    out_ref):
    mm = w2_ref.dtype
    # Layer 1, both branches at once (row-split block-diagonal W1); f32 accumulation,
    # f32 bias row added afterwards.  The bias row also sets the carrier lane to 1.0.
    h = jnp.dot(x1_ref[...].astype(mm), w1a_ref[...], preferred_element_type=jnp.float32)
    h = h + jnp.dot(x2_ref[...].astype(mm), w1b_ref[...], preferred_element_type=jnp.float32)
    h = jnp.maximum(h + b1_ref[...], 0.0)
    # Layer 2, both branches; output lanes are already [a | b | 1 | 0...] -> concat is free.
    c = jnp.dot(h.astype(mm), w2_ref[...], preferred_element_type=jnp.float32)
    # fc3_com + ReLU (biases ride the carrier lane).
    h3 = jnp.maximum(
        jnp.dot(c.astype(mm), w3_ref[...], preferred_element_type=jnp.float32), 0.0)
    # fc4_com: (1, HC_P) @ (TB, HC_P)^T -> (1, TB), lane-dense on the batch axis.
    out_ref[...] = jax.lax.dot_general(
        w4_ref[...], h3.astype(mm), (((1,), (1,)), ((), ())),
        preferred_element_type=jnp.float32).astype(out_ref.dtype)


def prep_params(params, dim, hidden_size=50, dtype=jnp.bfloat16, lane_multiple=128):
    """One-time weight prep: transpose, fuse block-diagonally, fold biases, zero-pad.

    Padded rows/cols are exactly zero and a dedicated carrier lane (index 2H) is kept
    at exactly 1.0 through the whole network, so folded biases (layers 2..4) are exact.
    Keep lane_multiple=128 on all chips: the kernel is DMA/overhead-bound, so 256-wide
    padding only adds zero MACs and memory traffic.
    """
    d0, d1 = dim
    H = hidden_size
    HC = 2 * H
    HC_P = _round_up(HC + 1, lane_multiple)   # +1 lane: constant-1 carrier
    CARRY = HC

    # Layer 1, split per input branch (rows = raw input features -> x needs no padding).
    w1a = jnp.zeros((d0, HC_P), jnp.float32).at[:, :H].set(params["w1_t1"].T)
    w1b = jnp.zeros((d1, HC_P), jnp.float32).at[:, H:HC].set(params["w1_t2"].T)
    b1 = jnp.zeros((1, HC_P), jnp.float32)
    b1 = b1.at[0, :H].set(params["b1_t1"])
    b1 = b1.at[0, H:HC].set(params["b1_t2"])
    b1 = b1.at[0, CARRY].set(1.0)             # establishes the carrier lane

    w2 = jnp.zeros((HC_P, HC_P), jnp.float32)
    w2 = w2.at[:H, :H].set(params["w2_t1"].T)
    w2 = w2.at[H:HC, H:HC].set(params["w2_t2"].T)
    w2 = w2.at[CARRY, :H].set(params["b2_t1"])
    w2 = w2.at[CARRY, H:HC].set(params["b2_t2"])
    w2 = w2.at[CARRY, CARRY].set(1.0)

    w3 = jnp.zeros((HC_P, HC_P), jnp.float32)
    w3 = w3.at[:HC, :HC].set(params["w3_com"].T)
    w3 = w3.at[CARRY, :HC].set(params["b3_com"])
    w3 = w3.at[CARRY, CARRY].set(1.0)

    w4 = jnp.zeros((1, HC_P), jnp.float32)
    w4 = w4.at[0, :HC].set(params["w4_com"].reshape(-1))
    w4 = w4.at[0, CARRY].set(params["b4_com"][0])

    return dict(
        w1a=w1a.astype(dtype), w1b=w1b.astype(dtype), b1=b1,   # b1 stays f32
        w2=w2.astype(dtype), w3=w3.astype(dtype), w4=w4.astype(dtype),
        dim0=d0, dim1=d1, hc_p=HC_P, dtype=dtype,
    )


def network_forward(x1, x2, prepped):
    """Pallas forward of `Network`. x1: [B, dim0], x2: [B, dim1] -> [B, 1] (f32)."""
    B = x1.shape[0]
    d0, d1, HC_P = prepped["dim0"], prepped["dim1"], prepped["hc_p"]

    # Batch tiling:
    #  * small B: a single tile, rows rounded to the 8-sublane multiple;
    #  * B > 256: >= 2 tiles (so ("parallel",) can use both v7x TensorCores), capped near
    #    2048 rows/tile to amortise the ~0.35us per-grid-step overhead while staying far
    #    below scoped VMEM.  Multi-tile TB is a multiple of 128 so the lane-dense (1, TB)
    #    output block is legal; num_tiles is recomputed from TB so padding < one tile.
    if B <= 256:
        TB = _round_up(B, 8)
        num_tiles = 1
    else:
        target_tiles = max(2, _cdiv(B, 2048))
        TB = _round_up(_cdiv(B, target_tiles), 128)
        num_tiles = _cdiv(B, TB)
    B_pad = TB * num_tiles
    # Partial last blocks of x1/x2 are handled by Pallas (undefined pad rows only feed
    # output lanes that get sliced off below), so no wrapper-side padding / repack.

    flops = 2 * B_pad * HC_P * (d0 + d1 + 2 * HC_P + 1)
    bytes_accessed = (
        x1.size * x1.dtype.itemsize + x2.size * x2.dtype.itemsize
        + sum(prepped[k].size * prepped[k].dtype.itemsize
              for k in ("w1a", "w1b", "b1", "w2", "w3", "w4"))
        + B_pad * 4)

    out = pl.pallas_call(
        _network_kernel,
        out_shape=jax.ShapeDtypeStruct((1, B_pad), jnp.float32),
        grid_spec=pltpu.PrefetchScalarGridSpec(
            num_scalar_prefetch=0,
            grid=(num_tiles,),
            in_specs=[
                pl.BlockSpec((TB, d0), lambda i: (i, 0)),      # x1 tile (pipelined over batch)
                pl.BlockSpec((TB, d1), lambda i: (i, 0)),      # x2 tile
                pl.BlockSpec((d0, HC_P), lambda i: (0, 0)),    # resident fused weights
                pl.BlockSpec((d1, HC_P), lambda i: (0, 0)),    # (constant index_maps -> no
                pl.BlockSpec((1, HC_P), lambda i: (0, 0)),     #  re-DMA across grid steps)
                pl.BlockSpec((HC_P, HC_P), lambda i: (0, 0)),
                pl.BlockSpec((HC_P, HC_P), lambda i: (0, 0)),
                pl.BlockSpec((1, HC_P), lambda i: (0, 0)),
            ],
            out_specs=pl.BlockSpec((1, TB), lambda i: (0, i)),  # lane-dense output row
        ),
        compiler_params=pltpu.CompilerParams(
            dimension_semantics=("parallel",),
        ),
        cost_estimate=pl.CostEstimate(flops=flops, transcendentals=0,
                                      bytes_accessed=bytes_accessed),
    )(x1, x2, prepped["w1a"], prepped["w1b"], prepped["b1"],
      prepped["w2"], prepped["w3"], prepped["w4"])
    return out[0, :B].reshape(B, 1)


def init_params(key, dim, hidden_size=50):
    """Deterministic synthetic init matching nn.Linear shapes (weight: [out, in])."""
    ks = jax.random.split(key, 12)

    def lin(kw, kb, fan_in, fan_out):
        bound = 1.0 / jnp.sqrt(fan_in)
        w = jax.random.uniform(kw, (fan_out, fan_in), jnp.float32, -bound, bound)
        b = jax.random.uniform(kb, (fan_out,), jnp.float32, -bound, bound)
        return w, b

    w1_t1, b1_t1 = lin(ks[0], ks[1], dim[0], hidden_size)
    w2_t1, b2_t1 = lin(ks[2], ks[3], hidden_size, hidden_size)
    w1_t2, b1_t2 = lin(ks[4], ks[5], dim[1], hidden_size)
    w2_t2, b2_t2 = lin(ks[6], ks[7], hidden_size, hidden_size)
    w3_com, b3_com = lin(ks[8], ks[9], hidden_size * 2, hidden_size * 2)
    w4_com, b4_com = lin(ks[10], ks[11], hidden_size * 2, 1)
    return dict(
        w1_t1=w1_t1, b1_t1=b1_t1, w2_t1=w2_t1, b2_t1=b2_t1,
        w1_t2=w1_t2, b1_t2=b1_t2, w2_t2=w2_t2, b2_t2=b2_t2,
        w3_com=w3_com, b3_com=b3_com, w4_com=w4_com, b4_com=b4_com,
    )


def _reference_forward(x1, x2, p):
    """Pure-JAX reference mirroring the PyTorch module (full-precision matmuls)."""
    hi = jax.lax.Precision.HIGHEST
    dot = lambda a, b: jnp.dot(a, b, precision=hi)
    a = dot(jnp.maximum(dot(x1, p["w1_t1"].T) + p["b1_t1"], 0.0), p["w2_t1"].T) + p["b2_t1"]
    b = dot(jnp.maximum(dot(x2, p["w1_t2"].T) + p["b1_t2"], 0.0), p["w2_t2"].T) + p["b2_t2"]
    c = jnp.concatenate([a, b], axis=1)
    h = jnp.maximum(dot(c, p["w3_com"].T) + p["b3_com"], 0.0)
    return dot(h, p["w4_com"].T) + p["b4_com"]


if __name__ == "__main__":
    # Small shapes consistent with the module: dim = (32, 16), batch = 8, hidden = 50.
    key = jax.random.PRNGKey(0)
    k_params, k_x1, k_x2, k_y1, k_y2 = jax.random.split(key, 5)

    dim = (32, 16)
    batch = 8
    hidden = 50

    params = init_params(k_params, dim, hidden)
    x1 = jax.random.normal(k_x1, (batch, dim[0]), jnp.float32)
    x2 = jax.random.normal(k_x2, (batch, dim[1]), jnp.float32)
    ref = _reference_forward(x1, x2, params)

    # bf16 matmul path (single-tile): one-time prep, jitted hot path.
    prep_bf16 = prep_params(params, dim, hidden, dtype=jnp.bfloat16)
    fwd_bf16 = jax.jit(lambda a, b: network_forward(a, b, prep_bf16))
    out_bf16 = jax.block_until_ready(fwd_bf16(x1, x2))
    assert out_bf16.shape == (batch, 1), out_bf16.shape
    assert jnp.allclose(out_bf16, ref, atol=3e-2, rtol=3e-2), (out_bf16, ref)

    # f32 matmul path, small batch (exactness of fusion / padding / bias folding).
    prep_f32 = prep_params(params, dim, hidden, dtype=jnp.float32)
    fwd_f32 = jax.jit(lambda a, b: network_forward(a, b, prep_f32))
    out_f32 = jax.block_until_ready(fwd_f32(x1, x2))
    assert out_f32.shape == (batch, 1), out_f32.shape
    assert jnp.allclose(out_f32, ref, atol=5e-3, rtol=5e-3), (out_f32, ref)

    # f32 path, larger ragged batch: exercises the multi-tile grid, the partial last
    # input block, and the lane-dense (1, B_pad) output layout.
    batch2 = 300
    y1 = jax.random.normal(k_y1, (batch2, dim[0]), jnp.float32)
    y2 = jax.random.normal(k_y2, (batch2, dim[1]), jnp.float32)
    ref2 = _reference_forward(y1, y2, params)
    out2 = jax.block_until_ready(fwd_f32(y1, y2))
    assert out2.shape == (batch2, 1), out2.shape
    assert jnp.allclose(out2, ref2, atol=5e-3, rtol=5e-3), (out2, ref2)

    print("KERNEL_OK")
</pallas_src>

<mosaic_0001>
module attributes {stable_mosaic.version = 11 : i64} {
  func.func @_network_kernel(%arg0: i32, %arg1: memref<8x32xf32, #tpu.memory_space<vmem>>, %arg2: memref<8x16xf32, #tpu.memory_space<vmem>>, %arg3: memref<32x128xbf16, #tpu.memory_space<vmem>>, %arg4: memref<16x128xbf16, #tpu.memory_space<vmem>>, %arg5: memref<1x128xf32, #tpu.memory_space<vmem>>, %arg6: memref<128x128xbf16, #tpu.memory_space<vmem>>, %arg7: memref<128x128xbf16, #tpu.memory_space<vmem>>, %arg8: memref<1x128xbf16, #tpu.memory_space<vmem>>, %arg9: memref<1x8xf32, #tpu.memory_space<vmem>>) attributes {dimension_semantics = [#tpu.dimension_semantics<parallel>], iteration_bounds = array<i64: 1>, scalar_prefetch = 0 : i64, scratch_operands = 0 : i64, tpu.core_type = #tpu.core_type<tc>, window_params = [{transform_indices = @transform_0, window_bounds = array<i64: 8, 32>}, {transform_indices = @transform_1, window_bounds = array<i64: 8, 16>}, {pipeline_mode = #tpu.pipeline_mode<synchronous>, transform_indices = @transform_2, window_bounds = array<i64: 32, 128>}, {pipeline_mode = #tpu.pipeline_mode<synchronous>, transform_indices = @transform_3, window_bounds = array<i64: 16, 128>}, {pipeline_mode = #tpu.pipeline_mode<synchronous>, transform_indices = @transform_4, window_bounds = array<i64: 1, 128>}, {pipeline_mode = #tpu.pipeline_mode<synchronous>, transform_indices = @transform_5, window_bounds = array<i64: 128, 128>}, {pipeline_mode = #tpu.pipeline_mode<synchronous>, transform_indices = @transform_6, window_bounds = array<i64: 128, 128>}, {pipeline_mode = #tpu.pipeline_mode<synchronous>, transform_indices = @transform_7, window_bounds = array<i64: 1, 128>}, {transform_indices = @transform_8, window_bounds = array<i64: 1, 8>}]} {
    %c0 = arith.constant 0 : index
    %c0_0 = arith.constant 0 : index
    %0 = vector.load %arg1[%c0, %c0_0] : memref<8x32xf32, #tpu.memory_space<vmem>>, vector<8x32xf32>
    %1 = arith.truncf %0 : vector<8x32xf32> to vector<8x32xbf16>
    %c0_1 = arith.constant 0 : index
    %c0_2 = arith.constant 0 : index
    %2 = vector.load %arg3[%c0_1, %c0_2] : memref<32x128xbf16, #tpu.memory_space<vmem>>, vector<32x128xbf16>
    %cst = arith.constant dense<0.000000e+00> : vector<8x128xf32>
    %3 = tpu.matmul %1, %2, %cst {dimension_numbers = #tpu.dot_dimension_numbers<[1], [0], [0], [1], [0, 0, 1, 1], [], []>} : vector<8x32xbf16>, vector<32x128xbf16>, vector<8x128xf32> -> vector<8x128xf32>
    %c0_3 = arith.constant 0 : index
    %c0_4 = arith.constant 0 : index
    %4 = vector.load %arg2[%c0_3, %c0_4] : memref<8x16xf32, #tpu.memory_space<vmem>>, vector<8x16xf32>
    %5 = arith.truncf %4 : vector<8x16xf32> to vector<8x16xbf16>
    %c0_5 = arith.constant 0 : index
    %c0_6 = arith.constant 0 : index
    %6 = vector.load %arg4[%c0_5, %c0_6] : memref<16x128xbf16, #tpu.memory_space<vmem>>, vector<16x128xbf16>
    %cst_7 = arith.constant dense<0.000000e+00> : vector<8x128xf32>
    %7 = tpu.matmul %5, %6, %cst_7 {dimension_numbers = #tpu.dot_dimension_numbers<[1], [0], [0], [1], [0, 0, 1, 1], [], []>} : vector<8x16xbf16>, vector<16x128xbf16>, vector<8x128xf32> -> vector<8x128xf32>
    %8 = arith.addf %3, %7 : vector<8x128xf32>
    %c0_8 = arith.constant 0 : index
    %c0_9 = arith.constant 0 : index
    %9 = vector.load %arg5[%c0_8, %c0_9] : memref<1x128xf32, #tpu.memory_space<vmem>>, vector<1x128xf32>
    %10 = vector.broadcast %9 : vector<1x128xf32> to vector<8x128xf32>
    %11 = arith.addf %8, %10 : vector<8x128xf32>
    %cst_10 = arith.constant 0.000000e+00 : f32
    %12 = vector.broadcast %cst_10 : f32 to vector<8x128xf32>
    %13 = arith.maximumf %11, %12 : vector<8x128xf32>
    %14 = arith.truncf %13 : vector<8x128xf32> to vector<8x128xbf16>
    %c0_11 = arith.constant 0 : index
    %c0_12 = arith.constant 0 : index
    %15 = vector.load %arg6[%c0_11, %c0_12] : memref<128x128xbf16, #tpu.memory_space<vmem>>, vector<128x128xbf16>
    %cst_13 = arith.constant dense<0.000000e+00> : vector<8x128xf32>
    %16 = tpu.matmul %14, %15, %cst_13 {dimension_numbers = #tpu.dot_dimension_numbers<[1], [0], [0], [1], [0, 0, 1, 1], [], []>} : vector<8x128xbf16>, vector<128x128xbf16>, vector<8x128xf32> -> vector<8x128xf32>
    %17 = arith.truncf %16 : vector<8x128xf32> to vector<8x128xbf16>
    %c0_14 = arith.constant 0 : index
    %c0_15 = arith.constant 0 : index
    %18 = vector.load %arg7[%c0_14, %c0_15] : memref<128x128xbf16, #tpu.memory_space<vmem>>, vector<128x128xbf16>
    %cst_16 = arith.constant dense<0.000000e+00> : vector<8x128xf32>
    %19 = tpu.matmul %17, %18, %cst_16 {dimension_numbers = #tpu.dot_dimension_numbers<[1], [0], [0], [1], [0, 0, 1, 1], [], []>} : vector<8x128xbf16>, vector<128x128xbf16>, vector<8x128xf32> -> vector<8x128xf32>
    %cst_17 = arith.constant 0.000000e+00 : f32
    %20 = vector.broadcast %cst_17 : f32 to vector<8x128xf32>
    %21 = arith.maximumf %19, %20 : vector<8x128xf32>
    %c0_18 = arith.constant 0 : index
    %c0_19 = arith.constant 0 : index
    %22 = vector.load %arg8[%c0_18, %c0_19] : memref<1x128xbf16, #tpu.memory_space<vmem>>, vector<1x128xbf16>
    %23 = arith.truncf %21 : vector<8x128xf32> to vector<8x128xbf16>
    %cst_20 = arith.constant dense<0.000000e+00> : vector<1x8xf32>
    %24 = tpu.matmul %22, %23, %cst_20 {dimension_numbers = #tpu.dot_dimension_numbers<[1], [1], [0], [0], [0, 0, 1, 0], [], []>} : vector<1x128xbf16>, vector<8x128xbf16>, vector<1x8xf32> -> vector<1x8xf32>
    %c0_21 = arith.constant 0 : index
    %c0_22 = arith.constant 0 : index
    %25 = vector.load %arg9[%c0_21, %c0_22] : memref<1x8xf32, #tpu.memory_space<vmem>>, vector<1x8xf32>
    tpu.vector_store %arg9[%c0_21, %c0_22], %24 {strides = array<i32>} : memref<1x8xf32, #tpu.memory_space<vmem>>, vector<1x8xf32>,
    return
  }
  func.func @transform_0(%arg0: i32) -> (i32, i32) {
    %c0_i32 = arith.constant 0 : i32
    %c0_i32_0 = arith.constant 0 : i32
    return %arg0, %c0_i32 : i32, i32
  }
  func.func @transform_1(%arg0: i32) -> (i32, i32) {
    %c0_i32 = arith.constant 0 : i32
    %c0_i32_0 = arith.constant 0 : i32
    return %arg0, %c0_i32 : i32, i32
  }
  func.func @transform_2(%arg0: i32) -> (i32, i32) {
    %c0_i32 = arith.constant 0 : i32
    %c0_i32_0 = arith.constant 0 : i32
    %c0_i32_1 = arith.constant 0 : i32
    return %c0_i32, %c0_i32_0 : i32, i32
  }
  func.func @transform_3(%arg0: i32) -> (i32, i32) {
    %c0_i32 = arith.constant 0 : i32
    %c0_i32_0 = arith.constant 0 : i32
    %c0_i32_1 = arith.constant 0 : i32
    return %c0_i32, %c0_i32_0 : i32, i32
  }
  func.func @transform_4(%arg0: i32) -> (i32, i32) {
    %c0_i32 = arith.constant 0 : i32
    %c0_i32_0 = arith.constant 0 : i32
    %c0_i32_1 = arith.constant 0 : i32
    return %c0_i32, %c0_i32_0 : i32, i32
  }
  func.func @transform_5(%arg0: i32) -> (i32, i32) {
    %c0_i32 = arith.constant 0 : i32
    %c0_i32_0 = arith.constant 0 : i32
    %c0_i32_1 = arith.constant 0 : i32
    return %c0_i32, %c0_i32_0 : i32, i32
  }
  func.func @transform_6(%arg0: i32) -> (i32, i32) {
    %c0_i32 = arith.constant 0 : i32
    %c0_i32_0 = arith.constant 0 : i32
    %c0_i32_1 = arith.constant 0 : i32
    return %c0_i32, %c0_i32_0 : i32, i32
  }
  func.func @transform_7(%arg0: i32) -> (i32, i32) {
    %c0_i32 = arith.constant 0 : i32
    %c0_i32_0 = arith.constant 0 : i32
    %c0_i32_1 = arith.constant 0 : i32
    return %c0_i32, %c0_i32_0 : i32, i32
  }
  func.func @transform_8(%arg0: i32) -> (i32, i32) {
    %c0_i32 = arith.constant 0 : i32
    %c0_i32_0 = arith.constant 0 : i32
    return %c0_i32, %arg0 : i32, i32
  }
}

</mosaic_0001>

<llo_original>
// kernel: _lambda_.1
$region0: #{_lambda_.1}
  #allocation0 [shape = 'u32[]', space=smem, size = 0x4, offset = 0x4, fixed_abs, tag = 'smem constant byte address 0x4 - core index']
  #allocation1 [shape = 'u32[144,128]{1,0:T(1,128)}', space=vmem, size = 0x12000, scoped, tag = 'internal scratch']
  %s0 = inlined_call_operand.vmem [shape: f32[8,32], index: 0, kind: input, shape index: {}]
  %s1 = inlined_call_operand.hbm [shape: f32[8,16], index: 1, kind: input, shape index: {}]
  %s2 = inlined_call_operand.vmem [shape: bf16[32,128], index: 2, kind: input, shape index: {}]
  %s3 = inlined_call_operand.vmem [shape: bf16[16,128], index: 3, kind: input, shape index: {}]
  %s4 = inlined_call_operand.vmem [shape: f32[1,128], index: 4, kind: input, shape index: {}]
  %s5 = inlined_call_operand.hbm [shape: bf16[128,128], index: 5, kind: input, shape index: {}]
  %s6 = inlined_call_operand.hbm [shape: bf16[128,128], index: 6, kind: input, shape index: {}]
  %s7 = inlined_call_operand.vmem [shape: bf16[1,128], index: 7, kind: input, shape index: {}]
  %s8 = inlined_call_operand.hbm [shape: f32[1,8], index: 8, kind: output, shape index: {}]
  %s9 = sld [smem:[#allocation0]]
  $region54: #{_lambda_.1} parent=0
    _
  %s11 = ssub.s32 1, %s9
  %s12 = scalar_select 0, %s11, %s9
  $region1: #{_lambda_.1} parent=0
    #allocation2 [shape = 'u8[4096]{0}', space=vmem, size = 0x1000, scoped, tag = 'input window, operand 1, single buffered']
    #allocation3 [shape = 's32[1]{0}', space=sflag, size = 0x4, scoped, tag = 'scoped memory for _lambda_.1']
    #allocation4 [shape = 's32[1]{0}', space=sflag, size = 0x4, scoped, tag = 'scoped memory for _lambda_.1']
    #allocation5 [shape = 'u8[32768]{0}', space=vmem, size = 0x8000, scoped, tag = 'input window, operand 5, single buffered']
    #allocation6 [shape = 's32[1]{0}', space=sflag, size = 0x4, scoped, tag = 'scoped memory for _lambda_.1']
    #allocation7 [shape = 'u8[32768]{0}', space=vmem, size = 0x8000, scoped, tag = 'input window, operand 6, single buffered']
    #allocation8 [shape = 'u8[512]{0}', space=vmem, size = 0x400, scoped, tag = 'output window, operand 0, single buffered']
    %13 = vsyncpa [#allocation3], 0
    %14 = vsyncpa [#allocation6], 0
    %15 = vsyncpa [#allocation4], 0
    // Predicated region
    $region2: #{_lambda_.1} parent=1 // pred_check
      _
    $region3: #{_lambda_.1} parent=1 // pred_check_branch
      %17 = sbr.rel (0) target = $region5
    $region4: #{_lambda_.1} parent=1 // pred_region
      _
    $region5: #{_lambda_.1} parent=1 // pred_fallthru
      _
    // Predicated region
    $region6: #{_lambda_.1} parent=1 // pred_check
      _
    $region7: #{_lambda_.1} parent=1 // pred_check_branch
      %19 = sbr.rel (0) target = $region9
    $region8: #{_lambda_.1} parent=1 // pred_region
      %s21 = ssub.s32 128, 128
      %22 = vsyncadd [#allocation3], %s21
      %s24 = sshll.u32 [#allocation2], 4
      %s25 = int_to_ptr.vmem [resolvable:$true] %s24
      %27 = dma.hbm_to_vmem [thread:$0]  %s1, 128, %s25, [#allocation3]
    $region9: #{_lambda_.1} parent=1 // pred_fallthru
      _
    // Predicated region
    $region10: #{_lambda_.1} parent=1 // pred_check
      _
    $region11: #{_lambda_.1} parent=1 // pred_check_branch
      %29 = sbr.rel (0) target = $region13
    $region12: #{_lambda_.1} parent=1 // pred_region
      _
    $region13: #{_lambda_.1} parent=1 // pred_fallthru
      _
    // Predicated region
    $region14: #{_lambda_.1} parent=1 // pred_check
      _
    $region15: #{_lambda_.1} parent=1 // pred_check_branch
      %31 = sbr.rel (0) target = $region17
    $region16: #{_lambda_.1} parent=1 // pred_region
      _
    $region17: #{_lambda_.1} parent=1 // pred_fallthru
      _
    // Predicated region
    $region18: #{_lambda_.1} parent=1 // pred_check
      _
    $region19: #{_lambda_.1} parent=1 // pred_check_branch
      %33 = sbr.rel (0) target = $region21
    $region20: #{_lambda_.1} parent=1 // pred_region
      _
    $region21: #{_lambda_.1} parent=1 // pred_fallthru
      _
    // Predicated region
    $region22: #{_lambda_.1} parent=1 // pred_check
      _
    $region23: #{_lambda_.1} parent=1 // pred_check_branch
      %35 = sbr.rel (0) target = $region25
    $region24: #{_lambda_.1} parent=1 // pred_region
      %s37 = ssub.s32 1024, 1024
      %38 = vsyncadd [#allocation6], %s37
      %s39 = sshll.u32 [#allocation5], 4
      %s40 = int_to_ptr.vmem [resolvable:$true] %s39
      %45 = dma.hbm_to_vmem [thread:$0]  %s5, 1024, %s40, [#allocation6], 64, 64, 4
    $region25: #{_lambda_.1} parent=1 // pred_fallthru
      _
    // Predicated region
    $region26: #{_lambda_.1} parent=1 // pred_check
      _
    $region27: #{_lambda_.1} parent=1 // pred_check_branch
      %47 = sbr.rel (0) target = $region29
    $region28: #{_lambda_.1} parent=1 // pred_region
      %s49 = ssub.s32 1024, 1024
      %50 = vsyncadd [#allocation6], %s49
      %s51 = sshll.u32 [#allocation7], 4
      %s52 = int_to_ptr.vmem [resolvable:$true] %s51
      %57 = dma.hbm_to_vmem [thread:$0]  %s6, 1024, %s52, [#allocation6], 64, 64, 4
    $region29: #{_lambda_.1} parent=1 // pred_fallthru
      _
    // Predicated region
    $region30: #{_lambda_.1} parent=1 // pred_check
      _
    $region31: #{_lambda_.1} parent=1 // pred_check_branch
      %59 = sbr.rel (0) target = $region33
    $region32: #{_lambda_.1} parent=1 // pred_region
      _
    $region33: #{_lambda_.1} parent=1 // pred_fallthru
      _
    // Predicated region
    $region34: #{_lambda_.1} parent=1 // pred_check
      _
    $region35: #{_lambda_.1} parent=1 // pred_check_branch
      %61 = sbr.rel (0) target = $region37
    $region36: #{_lambda_.1} parent=1 // pred_region
      %62 = dma.done [#allocation3], 128
    $region37: #{_lambda_.1} parent=1 // pred_fallthru
      _
    // Predicated region
    $region38: #{_lambda_.1} parent=1 // pred_check
      _
    $region39: #{_lambda_.1} parent=1 // pred_check_branch
      %64 = sbr.rel (0) target = $region41
    $region40: #{_lambda_.1} parent=1 // pred_region
      %65 = dma.done [#allocation6], 1024
    $region41: #{_lambda_.1} parent=1 // pred_fallthru
      _
    // Predicated region
    $region42: #{_lambda_.1} parent=1 // pred_check
      _
    $region43: #{_lambda_.1} parent=1 // pred_check_branch
      %67 = sbr.rel (0) target = $region45
    $region44: #{_lambda_.1} parent=1 // pred_region
      %68 = dma.done [#allocation6], 1024
    $region45: #{_lambda_.1} parent=1 // pred_fallthru
      _
    %v70 = vld [vmem:[%s0] sm:$0xff]
    %v71 = vpack.c.bf16 %v70, %v70
    %v72 = vld [vmem:[%s2] sm:$0xf]
    %v73 = vld [vmem:[%s2 + $0x4] sm:$0xf]
    %v74 = vld [vmem:[%s2 + $0x8] sm:$0xf]
    %v75 = vld [vmem:[%s2 + $0xc] sm:$0xf]
    %v76 = vld [vmem:[#allocation2] sm:$0xff]
    %v77 = vpack.c.bf16 %v76, %v76
    %v78 = vld [vmem:[%s3] sm:$0xf]
    %v79 = vld [vmem:[%s3 + $0x4] sm:$0xf]
    %v82 = vunpack.c.l.b16 %v78
    %v83 = vunpack.c.l.b16 %v79
    %v84 = vpack.c.b16 %v83, %v82
    %vm86 = vcmask 130048
    %v88 = vsel %vm86, %v77, 0
    %90 = vmatprep.subr.bf16.mxu0 0
    %91 = vmatpush1.bf16.msra.mxu0 %v84
    %92 = vmatprep.subr.bf16.mxu0 0
    %93 = vmatpush1.bf16.msra.mxu0 0
    %94 = vmatprep.subr.bf16.mxu0 0
    %95 = vmatpush1.bf16.msra.mxu0 0
    %96 = vmatprep.subr.bf16.mxu0 0
    %97 = vmatpush1.bf16.msra.mxu0 0
    %98 = vmatprep.subr.bf16.mxu0 0
    %99 = vmatpush1.bf16.msra.mxu0 0
    %100 = vmatprep.subr.bf16.mxu0 0
    %101 = vmatpush1.bf16.msra.mxu0 0
    %102 = vmatprep.subr.bf16.mxu0 0
    %103 = vmatpush1.bf16.msra.mxu0 0
    %104 = vmatprep.subr.bf16.mxu0 0
    %105 = vmatpush1.bf16.msra.mxu0 0
    %106 = vmatprep.subr.bf16.mxu0 0
    %107 = vmatpush1.bf16.msra.mxu0 0
    %108 = vmatprep.subr.bf16.mxu0 0
    %109 = vmatpush1.bf16.msra.mxu0 0
    %110 = vmatprep.subr.bf16.mxu0 0
    %111 = vmatpush1.bf16.msra.mxu0 0
    %112 = vmatprep.subr.bf16.mxu0 0
    %113 = vmatpush1.bf16.msra.mxu0 0
    %114 = vmatprep.subr.bf16.mxu0 0
    %115 = vmatpush1.bf16.msra.mxu0 0
    %116 = vmatprep.subr.bf16.mxu0 0
    %117 = vmatpush1.bf16.msra.mxu0 0
    %118 = vmatprep.subr.bf16.mxu0 0
    %119 = vmatpush1.bf16.msra.mxu0 0
    %120 = vmatprep.subr.bf16.mxu0 0
    %121 = vmatpush1.bf16.msra.mxu0 0
    %122 = vmatprep.mubr.bf16.mxu0 0
    %123 = vmatmul.mubr.bf16.gmra.mrb[0].mxu0 %v88
    %v124 = vpop.f32.mrb[0].mxu0
    %v125 = vadd.f32 0.0, %v124
    %v126 = vpop.f32.mrb[0].mxu0
    %v127 = vpop.f32.mrb[0].mxu0
    %v128 = vpop.f32.mrb[0].mxu0
    %129 = vdwg.mxu0
    %v134 = vunpack.c.l.b16 %v72
    %v135 = vunpack.c.l.b16 %v73
    %v136 = vunpack.c.l.b16 %v74
    %v137 = vunpack.c.l.b16 %v75
    %v138 = vpack.c.b16 %v135, %v134
    %v139 = vpack.c.b16 %v137, %v136
    %vm142 = vcmask 261120
    %v144 = vsel %vm142, %v71, 0
    %146 = vmatprep.subr.bf16.mxu0 0
    %147 = vmatpush1.bf16.msra.mxu0 %v138
    %148 = vmatprep.subr.bf16.mxu0 0
    %149 = vmatpush1.bf16.msra.mxu0 %v139
    %150 = vmatprep.subr.bf16.mxu0 0
    %151 = vmatpush1.bf16.msra.mxu0 0
    %152 = vmatprep.subr.bf16.mxu0 0
    %153 = vmatpush1.bf16.msra.mxu0 0
    %154 = vmatprep.subr.bf16.mxu0 0
    %155 = vmatpush1.bf16.msra.mxu0 0
    %156 = vmatprep.subr.bf16.mxu0 0
    %157 = vmatpush1.bf16.msra.mxu0 0
    %158 = vmatprep.subr.bf16.mxu0 0
    %159 = vmatpush1.bf16.msra.mxu0 0
    %160 = vmatprep.subr.bf16.mxu0 0
    %161 = vmatpush1.bf16.msra.mxu0 0
    %162 = vmatprep.subr.bf16.mxu0 0
    %163 = vmatpush1.bf16.msra.mxu0 0
    %164 = vmatprep.subr.bf16.mxu0 0
    %165 = vmatpush1.bf16.msra.mxu0 0
    %166 = vmatprep.subr.bf16.mxu0 0
    %167 = vmatpush1.bf16.msra.mxu0 0
    %168 = vmatprep.subr.bf16.mxu0 0
    %169 = vmatpush1.bf16.msra.mxu0 0
    %170 = vmatprep.subr.bf16.mxu0 0
    %171 = vmatpush1.bf16.msra.mxu0 0
    %172 = vmatprep.subr.bf16.mxu0 0
    %173 = vmatpush1.bf16.msra.mxu0 0
    %174 = vmatprep.subr.bf16.mxu0 0
    %175 = vmatpush1.bf16.msra.mxu0 0
    %176 = vmatprep.subr.bf16.mxu0 0
    %177 = vmatpush1.bf16.msra.mxu0 0
    %178 = vmatprep.mubr.bf16.mxu0 0
    %179 = vmatmul.mubr.bf16.gmra.mrb[0].mxu0 %v144
    %v180 = vpop.f32.mrb[0].mxu0
    %v181 = vadd.f32 %v125, %v180
    %v182 = vpop.f32.mrb[0].mxu0
    %v183 = vpop.f32.mrb[0].mxu0
    %v184 = vpop.f32.mrb[0].mxu0
    %185 = vdwg.mxu0
    %v186 = vld [vmem:[%s4] sm:$0x1]
    %v188 = vlaneseq
    %v189 = vshrl.u32 %v188, 7
    %v190 = vsub.s32 0, %v189
    %v191 = vrot.slane %v186, %v190
    %v193 = vadd.f32 %v181, %v191
    %v194 = vmax.f32 %v193, 0.0
    %v195 = vpack.c.bf16 %v194, %v194
    %v196 = vld [vmem:[#allocation5] sm:$0xf]
    %v197 = vld [vmem:[#allocation5 + $0x4] sm:$0xf]
    %v198 = vld [vmem:[#allocation5 + $0x8] sm:$0xf]
    %v199 = vld [vmem:[#allocation5 + $0xc] sm:$0xf]
    %v200 = vld [vmem:[#allocation5 + $0x10] sm:$0xf]
    %v201 = vld [vmem:[#allocation5 + $0x14] sm:$0xf]
    %v202 = vld [vmem:[#allocation5 + $0x18] sm:$0xf]
    %v203 = vld [vmem:[#allocation5 + $0x1c] sm:$0xf]
    %v204 = vld [vmem:[#allocation5 + $0x20] sm:$0xf]
    %v205 = vld [vmem:[#allocation5 + $0x24] sm:$0xf]
    %v206 = vld [vmem:[#allocation5 + $0x28] sm:$0xf]
    %v207 = vld [vmem:[#allocation5 + $0x2c] sm:$0xf]
    %v208 = vld [vmem:[#allocation5 + $0x30] sm:$0xf]
    %v209 = vld [vmem:[#allocation5 + $0x34] sm:$0xf]
    %v210 = vld [vmem:[#allocation5 + $0x38] sm:$0xf]
    %v211 = vld [vmem:[#allocation5 + $0x3c] sm:$0xf]
    %v228 = vunpack.c.l.b16 %v196
    %v229 = vunpack.c.l.b16 %v197
    %v230 = vunpack.c.l.b16 %v198
    %v231 = vunpack.c.l.b16 %v199
    %v232 = vunpack.c.l.b16 %v200
    %v233 = vunpack.c.l.b16 %v201
    %v234 = vunpack.c.l.b16 %v202
    %v235 = vunpack.c.l.b16 %v203
    %v236 = vunpack.c.l.b16 %v204
    %v237 = vunpack.c.l.b16 %v205
    %v238 = vunpack.c.l.b16 %v206
    %v239 = vunpack.c.l.b16 %v207
    %v240 = vunpack.c.l.b16 %v208
    %v241 = vunpack.c.l.b16 %v209
    %v242 = vunpack.c.l.b16 %v210
    %v243 = vunpack.c.l.b16 %v211
    %v244 = vpack.c.b16 %v229, %v228
    %v245 = vpack.c.b16 %v231, %v230
    %v246 = vpack.c.b16 %v233, %v232
    %v247 = vpack.c.b16 %v235, %v234
    %v248 = vpack.c.b16 %v237, %v236
    %v249 = vpack.c.b16 %v239, %v238
    %v250 = vpack.c.b16 %v241, %v240
    %v251 = vpack.c.b16 %v243, %v242
    %260 = vmatprep.subr.bf16.mxu0 0
    %261 = vmatpush1.bf16.msra.mxu0 %v244
    %262 = vmatprep.subr.bf16.mxu0 0
    %263 = vmatpush1.bf16.msra.mxu0 %v245
    %264 = vmatprep.subr.bf16.mxu0 0
    %265 = vmatpush1.bf16.msra.mxu0 %v246
    %266 = vmatprep.subr.bf16.mxu0 0
    %267 = vmatpush1.bf16.msra.mxu0 %v247
    %268 = vmatprep.subr.bf16.mxu0 0
    %269 = vmatpush1.bf16.msra.mxu0 %v248
    %270 = vmatprep.subr.bf16.mxu0 0
    %271 = vmatpush1.bf16.msra.mxu0 %v249
    %272 = vmatprep.subr.bf16.mxu0 0
    %273 = vmatpush1.bf16.msra.mxu0 %v250
    %274 = vmatprep.subr.bf16.mxu0 0
    %275 = vmatpush1.bf16.msra.mxu0 %v251
    %276 = vmatprep.subr.bf16.mxu0 0
    %277 = vmatpush1.bf16.msra.mxu0 0
    %278 = vmatprep.subr.bf16.mxu0 0
    %279 = vmatpush1.bf16.msra.mxu0 0
    %280 = vmatprep.subr.bf16.mxu0 0
    %281 = vmatpush1.bf16.msra.mxu0 0
    %282 = vmatprep.subr.bf16.mxu0 0
    %283 = vmatpush1.bf16.msra.mxu0 0
    %284 = vmatprep.subr.bf16.mxu0 0
    %285 = vmatpush1.bf16.msra.mxu0 0
    %286 = vmatprep.subr.bf16.mxu0 0
    %287 = vmatpush1.bf16.msra.mxu0 0
    %288 = vmatprep.subr.bf16.mxu0 0
    %289 = vmatpush1.bf16.msra.mxu0 0
    %290 = vmatprep.subr.bf16.mxu0 0
    %291 = vmatpush1.bf16.msra.mxu0 0
    %292 = vmatprep.mubr.bf16.mxu0 0
    %293 = vmatmul.mubr.bf16.gmra.mrb[0].mxu0 %v195
    %v294 = vpop.f32.mrb[0].mxu0
    %v295 = vadd.f32 0.0, %v294
    %v296 = vpop.f32.mrb[0].mxu0
    %v297 = vpop.f32.mrb[0].mxu0
    %v298 = vpop.f32.mrb[0].mxu0
    %299 = vdwg.mxu0
    %v300 = vpack.c.bf16 %v295, %v295
    %v301 = vld [vmem:[#allocation7] sm:$0xf]
    %v302 = vld [vmem:[#allocation7 + $0x4] sm:$0xf]
    %v303 = vld [vmem:[#allocation7 + $0x8] sm:$0xf]
    %v304 = vld [vmem:[#allocation7 + $0xc] sm:$0xf]
    %v305 = vld [vmem:[#allocation7 + $0x10] sm:$0xf]
    %v306 = vld [vmem:[#allocation7 + $0x14] sm:$0xf]
    %v307 = vld [vmem:[#allocation7 + $0x18] sm:$0xf]
    %v308 = vld [vmem:[#allocation7 + $0x1c] sm:$0xf]
    %v309 = vld [vmem:[#allocation7 + $0x20] sm:$0xf]
    %v310 = vld [vmem:[#allocation7 + $0x24] sm:$0xf]
    %v311 = vld [vmem:[#allocation7 + $0x28] sm:$0xf]
    %v312 = vld [vmem:[#allocation7 + $0x2c] sm:$0xf]
    %v313 = vld [vmem:[#allocation7 + $0x30] sm:$0xf]
    %v314 = vld [vmem:[#allocation7 + $0x34] sm:$0xf]
    %v315 = vld [vmem:[#allocation7 + $0x38] sm:$0xf]
    %v316 = vld [vmem:[#allocation7 + $0x3c] sm:$0xf]
    %v333 = vunpack.c.l.b16 %v301
    %v334 = vunpack.c.l.b16 %v302
    %v335 = vunpack.c.l.b16 %v303
    %v336 = vunpack.c.l.b16 %v304
    %v337 = vunpack.c.l.b16 %v305
    %v338 = vunpack.c.l.b16 %v306
    %v339 = vunpack.c.l.b16 %v307
    %v340 = vunpack.c.l.b16 %v308
    %v341 = vunpack.c.l.b16 %v309
    %v342 = vunpack.c.l.b16 %v310
    %v343 = vunpack.c.l.b16 %v311
    %v344 = vunpack.c.l.b16 %v312
    %v345 = vunpack.c.l.b16 %v313
    %v346 = vunpack.c.l.b16 %v314
    %v347 = vunpack.c.l.b16 %v315
    %v348 = vunpack.c.l.b16 %v316
    %v349 = vpack.c.b16 %v334, %v333
    %v350 = vpack.c.b16 %v336, %v335
    %v351 = vpack.c.b16 %v338, %v337
    %v352 = vpack.c.b16 %v340, %v339
    %v353 = vpack.c.b16 %v342, %v341
    %v354 = vpack.c.b16 %v344, %v343
    %v355 = vpack.c.b16 %v346, %v345
    %v356 = vpack.c.b16 %v348, %v347
    %365 = vmatprep.subr.bf16.mxu0 0
    %366 = vmatpush1.bf16.msra.mxu0 %v349
    %367 = vmatprep.subr.bf16.mxu0 0
    %368 = vmatpush1.bf16.msra.mxu0 %v350
    %369 = vmatprep.subr.bf16.mxu0 0
    %370 = vmatpush1.bf16.msra.mxu0 %v351
    %371 = vmatprep.subr.bf16.mxu0 0
    %372 = vmatpush1.bf16.msra.mxu0 %v352
    %373 = vmatprep.subr.bf16.mxu0 0
    %374 = vmatpush1.bf16.msra.mxu0 %v353
    %375 = vmatprep.subr.bf16.mxu0 0
    %376 = vmatpush1.bf16.msra.mxu0 %v354
    %377 = vmatprep.subr.bf16.mxu0 0
    %378 = vmatpush1.bf16.msra.mxu0 %v355
    %379 = vmatprep.subr.bf16.mxu0 0
    %380 = vmatpush1.bf16.msra.mxu0 %v356
    %381 = vmatprep.subr.bf16.mxu0 0
    %382 = vmatpush1.bf16.msra.mxu0 0
    %383 = vmatprep.subr.bf16.mxu0 0
    %384 = vmatpush1.bf16.msra.mxu0 0
    %385 = vmatprep.subr.bf16.mxu0 0
    %386 = vmatpush1.bf16.msra.mxu0 0
    %387 = vmatprep.subr.bf16.mxu0 0
    %388 = vmatpush1.bf16.msra.mxu0 0
    %389 = vmatprep.subr.bf16.mxu0 0
    %390 = vmatpush1.bf16.msra.mxu0 0
    %391 = vmatprep.subr.bf16.mxu0 0
    %392 = vmatpush1.bf16.msra.mxu0 0
    %393 = vmatprep.subr.bf16.mxu0 0
    %394 = vmatpush1.bf16.msra.mxu0 0
    %395 = vmatprep.subr.bf16.mxu0 0
    %396 = vmatpush1.bf16.msra.mxu0 0
    %397 = vmatprep.mubr.bf16.mxu0 0
    %398 = vmatmul.mubr.bf16.gmra.mrb[0].mxu0 %v300
    %v399 = vpop.f32.mrb[0].mxu0
    %v400 = vadd.f32 0.0, %v399
    %v401 = vpop.f32.mrb[0].mxu0
    %v402 = vpop.f32.mrb[0].mxu0
    %v403 = vpop.f32.mrb[0].mxu0
    %404 = vdwg.mxu0
    %v405 = vmax.f32 %v400, 0.0
    %v406 = vld [vmem:[%s7] sm:$0x1]
    %v407 = vpack.c.bf16 %v405, %v405
    %408 = vmatprep.subr.bf16.mxu0 0
    %409 = vmatpush1.bf16.xpose.msra.mxu0 %v407
    %410 = vmatprep.subr.bf16.mxu0 0
    %411 = vmatpush1.bf16.xpose.msra.mxu0 0
    %412 = vmatprep.subr.bf16.mxu0 0
    %413 = vmatpush1.bf16.xpose.msra.mxu0 0
    %414 = vmatprep.subr.bf16.mxu0 0
    %415 = vmatpush1.bf16.xpose.msra.mxu0 0
    %416 = vmatprep.subr.bf16.mxu0 0
    %417 = vmatpush1.bf16.xpose.msra.mxu0 0
    %418 = vmatprep.subr.bf16.mxu0 0
    %419 = vmatpush1.bf16.xpose.msra.mxu0 0
    %420 = vmatprep.subr.bf16.mxu0 0
    %421 = vmatpush1.bf16.xpose.msra.mxu0 0
    %422 = vmatprep.subr.bf16.mxu0 0
    %423 = vmatpush1.bf16.xpose.msra.mxu0 0
    %424 = vmatprep.subr.bf16.mxu0 0
    %425 = vmatpush1.bf16.xpose.msra.mxu0 0
    %426 = vmatprep.subr.bf16.mxu0 0
    %427 = vmatpush1.bf16.xpose.msra.mxu0 0
    %428 = vmatprep.subr.bf16.mxu0 0
    %429 = vmatpush1.bf16.xpose.msra.mxu0 0
    %430 = vmatprep.subr.bf16.mxu0 0
    %431 = vmatpush1.bf16.xpose.msra.mxu0 0
    %432 = vmatprep.subr.bf16.mxu0 0
    %433 = vmatpush1.bf16.xpose.msra.mxu0 0
    %434 = vmatprep.subr.bf16.mxu0 0
    %435 = vmatpush1.bf16.xpose.msra.mxu0 0
    %436 = vmatprep.subr.bf16.mxu0 0
    %437 = vmatpush1.bf16.xpose.msra.mxu0 0
    %438 = vmatprep.subr.bf16.mxu0 0
    %439 = vmatpush1.bf16.xpose.msra.mxu0 0
    %440 = vmatprep.mubr.bf16.mxu0 0
    %441 = vmatmul.mubr.bf16.gmra.mrb[0].mxu0 %v406
    %v442 = vpop.f32.mrb[0].mxu0
    %v443 = vadd.f32 0.0, %v442
    %v444 = vpop.f32.mrb[0].mxu0
    %v445 = vpop.f32.mrb[0].mxu0
    %v446 = vpop.f32.mrb[0].mxu0
    %447 = vdwg.mxu0
    %vm448 = vcmask 57344
    %449 = vst.msk [vmem:[#allocation8] sm:$0x1] %vm448, %v443
    // Predicated region
    $region46: #{_lambda_.1} parent=1 // pred_check
      _
    $region47: #{_lambda_.1} parent=1 // pred_check_branch
      %451 = sbr.rel (0) target = $region49
    $region48: #{_lambda_.1} parent=1 // pred_region
      %s453 = ssub.s32 16, 16
      %454 = vsyncadd [#allocation4], %s453
      %s456 = sshll.u32 [#allocation8], 4
      %s457 = int_to_ptr.vmem [resolvable:$true] %s456
      %459 = dma.vmem_to_hbm [thread:$0]  %s457, 16, %s8, [#allocation4]
    $region49: #{_lambda_.1} parent=1 // pred_fallthru
      _
    // Predicated region
    $region50: #{_lambda_.1} parent=1 // pred_check
      _
    $region51: #{_lambda_.1} parent=1 // pred_check_branch
      %461 = sbr.rel (0) target = $region53
    $region52: #{_lambda_.1} parent=1 // pred_region
      %462 = dma.done [#allocation4], 16
    $region53: #{_lambda_.1} parent=1 // pred_fallthru
      _
    %463 = vsyncpa [#allocation3], 1
    %464 = vsyncpa [#allocation6], 1
    %465 = vsyncpa [#allocation4], 1

</llo_original>
